<compile_context>
chip_gen: v5e
topology: v5e:2x2
jax: 0.10.0
libtpu: 0.0.40
codegen_flags: <defaults>
</compile_context>

<pallas_src>
import functools

import jax
import jax.numpy as jnp
from jax import lax
from jax.experimental import pallas as pl
from jax.experimental.pallas import tpu as pltpu

BN_EPS = 1e-5
NEG_SLOPE = 0.1


def _leaky_relu(v):
    return jnp.where(v > 0, v, NEG_SLOPE * v)


def _round_up(v, m):
    return (v + m - 1) // m * m


def regression_kernel(x_ref, y_ref, aggT_ref, w1_ref, b1_ref, gamma_ref,
                      beta_ref, w2_ref, b2_ref,
                      out_ref, loss_ref,
                      sum_ref, sumsq_ref, scale_ref, shift_ref, agg_acc_ref,
                      *, n_rows, n_agg, n_out, block_rows, matmul_dtype):
    p = pl.program_id(0)            # 0: BN-statistics pass, 1: output pass
    t = pl.program_id(1)            # row tile
    n_tiles = pl.num_programs(1)

    @pl.when((p == 0) & (t == 0))
    def _init():
        sum_ref[...] = jnp.zeros_like(sum_ref)
        sumsq_ref[...] = jnp.zeros_like(sumsq_ref)
        agg_acc_ref[...] = jnp.zeros_like(agg_acc_ref)

    # ---- Linear(in, hidden) + LeakyReLU(0.1) --------------------------------
    # Recomputed in both passes: cheaper than materializing the full hidden
    # activation in HBM, and keeps the kernel scalable in N.
    # bf16 cast only on the MXU operands; accumulation and everything
    # elementwise stays f32 (v5e-safe).
    x = x_ref[...]
    h = jnp.dot(x.astype(matmul_dtype), w1_ref[...].astype(matmul_dtype),
                preferred_element_type=jnp.float32) + b1_ref[...]
    h = _leaky_relu(h)

    @pl.when(p == 0)
    def _stats_pass():
        # One-pass batch statistics: sum and sum-of-squares, masking rows that
        # only exist because of batch padding.
        row = t * block_rows + lax.broadcasted_iota(
            jnp.int32, (block_rows, 1), 0)
        hm = jnp.where(row < n_rows, h, 0.0)
        sum_ref[...] += jnp.sum(hm, axis=0, keepdims=True)
        sumsq_ref[...] += jnp.sum(hm * hm, axis=0, keepdims=True)

        @pl.when(t == n_tiles - 1)
        def _finalize_bn():
            inv_n = 1.0 / n_rows
            mean = sum_ref[...] * inv_n
            var = jnp.maximum(sumsq_ref[...] * inv_n - mean * mean, 0.0)
            scale = gamma_ref[...] * lax.rsqrt(var + BN_EPS)
            scale_ref[...] = scale
            shift_ref[...] = beta_ref[...] - mean * scale

    @pl.when(p == 1)
    def _output_pass():
        # BatchNorm (precomputed scale/shift) + Linear(hidden, out) + LeakyReLU
        hn = h * scale_ref[...] + shift_ref[...]
        o = jnp.dot(hn.astype(matmul_dtype), w2_ref[...].astype(matmul_dtype),
                    preferred_element_type=jnp.float32) + b2_ref[...]
        o = _leaky_relu(o)
        out_ref[...] = o            # lane-dense (block_rows, 128) store

        # agg_mtx @ o accumulated tile-by-tile over the row axis:
        # aggT tile is (TM, MP); contract the row axis -> (MP, OP).
        # Padded rows / padded agg rows are zero, so no masking is needed.
        agg_acc_ref[...] += lax.dot_general(
            aggT_ref[...], o,
            dimension_numbers=(((0,), (0,)), ((), ())),
            preferred_element_type=jnp.float32)

        @pl.when(t == n_tiles - 1)
        def _finalize_loss():
            # Padded rows/cols of agg_acc and y are exactly zero, so summing the
            # padded tile and dividing by the TRUE element count gives the
            # torch MSE (mean over M * out_dim elements).
            diff = agg_acc_ref[...] - y_ref[...]
            loss_ref[0] = jnp.sum(diff * diff) * (1.0 / (n_agg * n_out))


def regression_forward(x, y, agg_mtx, params, *, block_rows=128,
                       matmul_dtype=jnp.bfloat16):
    """Returns (loss, x_out) exactly like Regression.forward(x, y, agg_mtx)."""
    w1, b1, gamma, beta, w2, b2 = params
    N, in_dim = x.shape
    hidden = w1.shape[1]
    out_dim = w2.shape[1]
    M = agg_mtx.shape[0]

    # Lane-pad feature axes to 128; sublane-pad the agg/target row axis to 8.
    IP = _round_up(in_dim, 128)
    HP = _round_up(hidden, 128)
    OP = _round_up(out_dim, 128)
    MP = _round_up(M, 8)
    TM = max(8, _round_up(min(block_rows, _round_up(N, 8)), 8))
    NP = _round_up(N, TM)
    n_tiles = NP // TM

    def pad2(a, r, c):
        a = a.astype(jnp.float32)
        return jnp.pad(a, ((0, r - a.shape[0]), (0, c - a.shape[1])))

    x_p = pad2(x, NP, IP)
    y_p = pad2(y, MP, OP)
    aggT_p = pad2(agg_mtx.T, NP, MP)       # (N, M) -> blocks tile the row axis
    w1_p = pad2(w1, IP, HP)
    b1_p = pad2(b1, 1, HP)
    gamma_p = pad2(gamma, 1, HP)
    beta_p = pad2(beta, 1, HP)
    w2_p = pad2(w2, HP, OP)
    b2_p = pad2(b2, 1, OP)

    kernel = functools.partial(
        regression_kernel,
        n_rows=N, n_agg=M, n_out=out_dim, block_rows=TM,
        matmul_dtype=matmul_dtype)

    flops = (2 * (2 * NP * IP * HP)       # first matmul, recomputed twice
             + 2 * NP * HP * OP           # second matmul
             + 2 * NP * MP * OP)          # agg contraction
    bytes_accessed = 4 * (2 * x_p.size + y_p.size + aggT_p.size + w1_p.size
                          + w2_p.size + 4 * HP + OP + NP * OP + 1)
    cost = pl.CostEstimate(flops=int(flops), transcendentals=int(HP),
                           bytes_accessed=int(bytes_accessed))

    grid_spec = pltpu.PrefetchScalarGridSpec(
        num_scalar_prefetch=0,
        grid=(2, n_tiles),
        in_specs=[
            pl.BlockSpec((TM, IP), lambda p, t: (t, 0)),       # x (row tiles)
            pl.BlockSpec((MP, OP), lambda p, t: (0, 0)),       # y (resident)
            pl.BlockSpec((TM, MP), lambda p, t: (p * t, 0)),   # agg^T (phase 1)
            pl.BlockSpec((IP, HP), lambda p, t: (0, 0)),       # W1 (resident)
            pl.BlockSpec((1, HP), lambda p, t: (0, 0)),        # b1
            pl.BlockSpec((1, HP), lambda p, t: (0, 0)),        # gamma
            pl.BlockSpec((1, HP), lambda p, t: (0, 0)),        # beta
            pl.BlockSpec((HP, OP), lambda p, t: (0, 0)),       # W2 (resident)
            pl.BlockSpec((1, OP), lambda p, t: (0, 0)),        # b2
        ],
        out_specs=(
            pl.BlockSpec((TM, OP), lambda p, t: (p * t, 0)),   # o, written phase 1
            pl.BlockSpec(memory_space=pltpu.MemorySpace.SMEM),  # scalar loss
        ),
        scratch_shapes=[
            pltpu.VMEM((1, HP), jnp.float32),    # sum(h)
            pltpu.VMEM((1, HP), jnp.float32),    # sum(h*h)
            pltpu.VMEM((1, HP), jnp.float32),    # BN scale
            pltpu.VMEM((1, HP), jnp.float32),    # BN shift
            pltpu.VMEM((MP, OP), jnp.float32),   # agg_mtx @ o accumulator
        ],
    )

    out_p, loss = pl.pallas_call(
        kernel,
        out_shape=(
            jax.ShapeDtypeStruct((NP, OP), jnp.float32),
            jax.ShapeDtypeStruct((1,), jnp.float32),
        ),
        grid_spec=grid_spec,
        compiler_params=pltpu.CompilerParams(
            # Both axes carry accumulators (BN stats / agg accumulator), so
            # they must stay 'arbitrary'.
            dimension_semantics=("arbitrary", "arbitrary")),
        cost_estimate=cost,
    )(x_p, y_p, aggT_p, w1_p, b1_p, gamma_p, beta_p, w2_p, b2_p)

    return loss[0], out_p[:N, :out_dim]


def init_params(key, in_dim, hidden_dim, out_dim):
    """Deterministic init mimicking PyTorch Linear default (U[-1/sqrt(fan_in), ..])."""
    k1, k2, k3, k4 = jax.random.split(key, 4)
    bound1 = 1.0 / jnp.sqrt(in_dim)
    bound2 = 1.0 / jnp.sqrt(hidden_dim)
    w1 = jax.random.uniform(k1, (in_dim, hidden_dim), jnp.float32, -bound1, bound1)
    b1 = jax.random.uniform(k2, (1, hidden_dim), jnp.float32, -bound1, bound1)
    gamma = jnp.ones((1, hidden_dim), jnp.float32)
    beta = jnp.zeros((1, hidden_dim), jnp.float32)
    w2 = jax.random.uniform(k3, (hidden_dim, out_dim), jnp.float32, -bound2, bound2)
    b2 = jax.random.uniform(k4, (1, out_dim), jnp.float32, -bound2, bound2)
    return (w1, b1, gamma, beta, w2, b2)


def regression_reference(x, y, agg_mtx, params):
    """Pure-JAX f32 reference for sanity checking."""
    w1, b1, gamma, beta, w2, b2 = params
    h = _leaky_relu(x @ w1 + b1)
    mean = jnp.mean(h, axis=0, keepdims=True)
    var = jnp.mean((h - mean) ** 2, axis=0, keepdims=True)
    h = (h - mean) * lax.rsqrt(var + BN_EPS) * gamma + beta
    o = _leaky_relu(h @ w2 + b2)
    loss = jnp.mean((agg_mtx @ o - y) ** 2)
    return loss, o


if __name__ == "__main__":
    # Small shapes consistent with the module (feature dims as in the toy
    # config); N=64 with 16-row tiles exercises the (2, 4) phase/row grid.
    N, in_dim, hidden_dim, out_dim, M = 64, 16, 32, 8, 4
    TM = 16

    key = jax.random.PRNGKey(0)
    kx, ky, ka, kp = jax.random.split(key, 4)

    x = jax.random.normal(kx, (N, in_dim), jnp.float32)
    y = jax.random.normal(ky, (M, out_dim), jnp.float32)
    # Dense stand-in for the sparse aggregation matrix used in torch.spmm.
    agg_mtx = jax.random.uniform(ka, (M, N), jnp.float32)
    agg_mtx = agg_mtx / jnp.sum(agg_mtx, axis=1, keepdims=True)

    params = init_params(kp, in_dim, hidden_dim, out_dim)
    loss_ref, out_ref = regression_reference(x, y, agg_mtx, params)

    # Exact (f32 MXU) path — tight tolerance.
    loss32, out32 = regression_forward(
        x, y, agg_mtx, params, block_rows=TM, matmul_dtype=jnp.float32)
    jax.block_until_ready((loss32, out32))
    assert jnp.allclose(out32, out_ref, atol=1e-4, rtol=1e-4)
    assert jnp.allclose(loss32, loss_ref, atol=1e-4, rtol=1e-4)

    # bf16-MXU path (f32 accumulation) — the v6e/v7x fast path, looser tolerance.
    loss_bf, out_bf = regression_forward(
        x, y, agg_mtx, params, block_rows=TM, matmul_dtype=jnp.bfloat16)
    jax.block_until_ready((loss_bf, out_bf))
    assert jnp.allclose(out_bf, out_ref, atol=1.5e-1, rtol=1.5e-1)
    assert jnp.allclose(loss_bf, loss_ref, atol=1.5e-1, rtol=1.5e-1)

    print("KERNEL_OK")
</pallas_src>

<mosaic_0001>
module attributes {stable_mosaic.version = 11 : i64} {
  func.func @regression_kernel(%arg0: i32, %arg1: i32, %arg2: memref<16x128xf32, #tpu.memory_space<vmem>>, %arg3: memref<8x128xf32, #tpu.memory_space<vmem>>, %arg4: memref<16x8xf32, #tpu.memory_space<vmem>>, %arg5: memref<128x128xf32, #tpu.memory_space<vmem>>, %arg6: memref<1x128xf32, #tpu.memory_space<vmem>>, %arg7: memref<1x128xf32, #tpu.memory_space<vmem>>, %arg8: memref<1x128xf32, #tpu.memory_space<vmem>>, %arg9: memref<128x128xf32, #tpu.memory_space<vmem>>, %arg10: memref<1x128xf32, #tpu.memory_space<vmem>>, %arg11: memref<16x128xf32, #tpu.memory_space<vmem>>, %arg12: memref<1xf32, #tpu.memory_space<smem>>, %arg13: memref<1x128xf32, #tpu.memory_space<vmem>>, %arg14: memref<1x128xf32, #tpu.memory_space<vmem>>, %arg15: memref<1x128xf32, #tpu.memory_space<vmem>>, %arg16: memref<1x128xf32, #tpu.memory_space<vmem>>, %arg17: memref<8x128xf32, #tpu.memory_space<vmem>>) attributes {dimension_semantics = [#tpu.dimension_semantics<arbitrary>, #tpu.dimension_semantics<arbitrary>], iteration_bounds = array<i64: 2, 4>, scalar_prefetch = 0 : i64, scratch_operands = 5 : i64, tpu.core_type = #tpu.core_type<tc>, window_params = [{transform_indices = @transform_0, window_bounds = array<i64: 16, 128>}, {pipeline_mode = #tpu.pipeline_mode<synchronous>, transform_indices = @transform_1, window_bounds = array<i64: 8, 128>}, {transform_indices = @transform_2, window_bounds = array<i64: 16, 8>}, {pipeline_mode = #tpu.pipeline_mode<synchronous>, transform_indices = @transform_3, window_bounds = array<i64: 128, 128>}, {pipeline_mode = #tpu.pipeline_mode<synchronous>, transform_indices = @transform_4, window_bounds = array<i64: 1, 128>}, {pipeline_mode = #tpu.pipeline_mode<synchronous>, transform_indices = @transform_5, window_bounds = array<i64: 1, 128>}, {pipeline_mode = #tpu.pipeline_mode<synchronous>, transform_indices = @transform_6, window_bounds = array<i64: 1, 128>}, {pipeline_mode = #tpu.pipeline_mode<synchronous>, transform_indices = @transform_7, window_bounds = array<i64: 128, 128>}, {pipeline_mode = #tpu.pipeline_mode<synchronous>, transform_indices = @transform_8, window_bounds = array<i64: 1, 128>}, {transform_indices = @transform_9, window_bounds = array<i64: 16, 128>}, {transform_indices = @transform_10, window_bounds = array<i64: 1>}]} {
    %c0_i32 = arith.constant 0 : i32
    %0 = arith.cmpi eq, %arg0, %c0_i32 : i32
    %c0_i32_0 = arith.constant 0 : i32
    %1 = arith.cmpi eq, %arg1, %c0_i32_0 : i32
    %2 = arith.andi %0, %1 : i1
    %3 = arith.extui %2 : i1 to i32
    %c0_i32_1 = arith.constant 0 : i32
    %4 = arith.cmpi ne, %3, %c0_i32_1 : i32
    scf.if %4 {
      %cst_12 = arith.constant 0.000000e+00 : f32
      %22 = vector.broadcast %cst_12 : f32 to vector<1x128xf32>
      %c0_13 = arith.constant 0 : index
      %c0_14 = arith.constant 0 : index
      %23 = vector.load %arg13[%c0_13, %c0_14] : memref<1x128xf32, #tpu.memory_space<vmem>>, vector<1x128xf32>
      tpu.vector_store %arg13[%c0_13, %c0_14], %22 {strides = array<i32>} : memref<1x128xf32, #tpu.memory_space<vmem>>, vector<1x128xf32>,
      %cst_15 = arith.constant 0.000000e+00 : f32
      %24 = vector.broadcast %cst_15 : f32 to vector<1x128xf32>
      %c0_16 = arith.constant 0 : index
      %c0_17 = arith.constant 0 : index
      %25 = vector.load %arg14[%c0_16, %c0_17] : memref<1x128xf32, #tpu.memory_space<vmem>>, vector<1x128xf32>
      tpu.vector_store %arg14[%c0_16, %c0_17], %24 {strides = array<i32>} : memref<1x128xf32, #tpu.memory_space<vmem>>, vector<1x128xf32>,
      %cst_18 = arith.constant 0.000000e+00 : f32
      %26 = vector.broadcast %cst_18 : f32 to vector<8x128xf32>
      %c0_19 = arith.constant 0 : index
      %c0_20 = arith.constant 0 : index
      %27 = vector.load %arg17[%c0_19, %c0_20] : memref<8x128xf32, #tpu.memory_space<vmem>>, vector<8x128xf32>
      tpu.vector_store %arg17[%c0_19, %c0_20], %26 {strides = array<i32>} : memref<8x128xf32, #tpu.memory_space<vmem>>, vector<8x128xf32>,
    } else {
    }
    %c0 = arith.constant 0 : index
    %c0_2 = arith.constant 0 : index
    %5 = vector.load %arg2[%c0, %c0_2] : memref<16x128xf32, #tpu.memory_space<vmem>>, vector<16x128xf32>
    %c0_3 = arith.constant 0 : index
    %c0_4 = arith.constant 0 : index
    %6 = vector.load %arg5[%c0_3, %c0_4] : memref<128x128xf32, #tpu.memory_space<vmem>>, vector<128x128xf32>
    %cst = arith.constant dense<0.000000e+00> : vector<16x128xf32>
    %7 = tpu.matmul %5, %6, %cst {dimension_numbers = #tpu.dot_dimension_numbers<[1], [0], [0], [1], [0, 0, 1, 1], [], []>} : vector<16x128xf32>, vector<128x128xf32>, vector<16x128xf32> -> vector<16x128xf32>
    %c0_5 = arith.constant 0 : index
    %c0_6 = arith.constant 0 : index
    %8 = vector.load %arg6[%c0_5, %c0_6] : memref<1x128xf32, #tpu.memory_space<vmem>>, vector<1x128xf32>
    %9 = vector.broadcast %8 : vector<1x128xf32> to vector<16x128xf32>
    %10 = arith.addf %7, %9 : vector<16x128xf32>
    %cst_7 = arith.constant 0.000000e+00 : f32
    %11 = vector.broadcast %cst_7 : f32 to vector<16x128xf32>
    %12 = arith.cmpf ogt, %10, %11 : vector<16x128xf32>
    %cst_8 = arith.constant 1.000000e-01 : f32
    %13 = vector.broadcast %cst_8 : f32 to vector<16x128xf32>
    %14 = arith.mulf %13, %10 : vector<16x128xf32>
    %15 = arith.select %12, %10, %14 : vector<16x128xi1>, vector<16x128xf32>
    %c0_i32_9 = arith.constant 0 : i32
    %16 = arith.cmpi eq, %arg0, %c0_i32_9 : i32
    %17 = arith.extui %16 : i1 to i32
    %c0_i32_10 = arith.constant 0 : i32
    %18 = arith.cmpi ne, %17, %c0_i32_10 : i32
    scf.if %18 {
      %c16_i32 = arith.constant 16 : i32
      %22 = arith.muli %arg1, %c16_i32 : i32
      %23 = tpu.iota {dimensions = array<i32: 0>} : vector<16x1xi32>
      %24 = vector.broadcast %22 : i32 to vector<16x1xi32>
      %25 = arith.addi %24, %23 : vector<16x1xi32>
      %c64_i32 = arith.constant 64 : i32
      %26 = vector.broadcast %c64_i32 : i32 to vector<16x1xi32>
      %27 = arith.cmpi slt, %25, %26 : vector<16x1xi32>
      %cst_12 = arith.constant 0.000000e+00 : f32
      %28 = vector.shape_cast %27 : vector<16x1xi1> to vector<16x1xi1>
      %29 = vector.broadcast %28 : vector<16x1xi1> to vector<16x128xi1>
      %30 = vector.broadcast %cst_12 : f32 to vector<16x128xf32>
      %31 = arith.select %29, %15, %30 : vector<16x128xi1>, vector<16x128xf32>
      %c0_13 = arith.constant 0 : index
      %c0_14 = arith.constant 0 : index
      %32 = vector.load %arg13[%c0_13, %c0_14] : memref<1x128xf32, #tpu.memory_space<vmem>>, vector<1x128xf32>
      %cst_15 = arith.constant dense<0.000000e+00> : vector<128xf32>
      %33 = vector.multi_reduction <add>, %31, %cst_15 [0] : vector<16x128xf32> to vector<128xf32>
      %34 = vector.shape_cast %33 : vector<128xf32> to vector<1x128xf32>
      %35 = arith.addf %32, %34 : vector<1x128xf32>
      %c0_16 = arith.constant 0 : index
      %c0_17 = arith.constant 0 : index
      %36 = vector.load %arg13[%c0_16, %c0_17] : memref<1x128xf32, #tpu.memory_space<vmem>>, vector<1x128xf32>
      tpu.vector_store %arg13[%c0_16, %c0_17], %35 {strides = array<i32>} : memref<1x128xf32, #tpu.memory_space<vmem>>, vector<1x128xf32>,
      %c0_18 = arith.constant 0 : index
      %c0_19 = arith.constant 0 : index
      %37 = vector.load %arg14[%c0_18, %c0_19] : memref<1x128xf32, #tpu.memory_space<vmem>>, vector<1x128xf32>
      %38 = arith.mulf %31, %31 : vector<16x128xf32>
      %cst_20 = arith.constant dense<0.000000e+00> : vector<128xf32>
      %39 = vector.multi_reduction <add>, %38, %cst_20 [0] : vector<16x128xf32> to vector<128xf32>
      %40 = vector.shape_cast %39 : vector<128xf32> to vector<1x128xf32>
      %41 = arith.addf %37, %40 : vector<1x128xf32>
      %c0_21 = arith.constant 0 : index
      %c0_22 = arith.constant 0 : index
      %42 = vector.load %arg14[%c0_21, %c0_22] : memref<1x128xf32, #tpu.memory_space<vmem>>, vector<1x128xf32>
      tpu.vector_store %arg14[%c0_21, %c0_22], %41 {strides = array<i32>} : memref<1x128xf32, #tpu.memory_space<vmem>>, vector<1x128xf32>,
      %c3_i32 = arith.constant 3 : i32
      %43 = arith.cmpi eq, %arg1, %c3_i32 : i32
      %44 = arith.extui %43 : i1 to i32
      %c0_i32_23 = arith.constant 0 : i32
      %45 = arith.cmpi ne, %44, %c0_i32_23 : i32
      scf.if %45 {
        %c0_24 = arith.constant 0 : index
        %c0_25 = arith.constant 0 : index
        %46 = vector.load %arg13[%c0_24, %c0_25] : memref<1x128xf32, #tpu.memory_space<vmem>>, vector<1x128xf32>
        %cst_26 = arith.constant 1.562500e-02 : f32
        %47 = vector.broadcast %cst_26 : f32 to vector<1x128xf32>
        %48 = arith.mulf %46, %47 : vector<1x128xf32>
        %c0_27 = arith.constant 0 : index
        %c0_28 = arith.constant 0 : index
        %49 = vector.load %arg14[%c0_27, %c0_28] : memref<1x128xf32, #tpu.memory_space<vmem>>, vector<1x128xf32>
        %cst_29 = arith.constant 1.562500e-02 : f32
        %50 = vector.broadcast %cst_29 : f32 to vector<1x128xf32>
        %51 = arith.mulf %49, %50 : vector<1x128xf32>
        %52 = arith.mulf %48, %48 : vector<1x128xf32>
        %53 = arith.subf %51, %52 : vector<1x128xf32>
        %cst_30 = arith.constant 0.000000e+00 : f32
        %54 = vector.broadcast %cst_30 : f32 to vector<1x128xf32>
        %55 = arith.maximumf %53, %54 : vector<1x128xf32>
        %c0_31 = arith.constant 0 : index
        %c0_32 = arith.constant 0 : index
        %56 = vector.load %arg7[%c0_31, %c0_32] : memref<1x128xf32, #tpu.memory_space<vmem>>, vector<1x128xf32>
        %cst_33 = arith.constant 9.99999974E-6 : f32
        %57 = vector.broadcast %cst_33 : f32 to vector<1x128xf32>
        %58 = arith.addf %55, %57 : vector<1x128xf32>
        %59 = math.rsqrt %58 : vector<1x128xf32>
        %60 = arith.mulf %56, %59 : vector<1x128xf32>
        %c0_34 = arith.constant 0 : index
        %c0_35 = arith.constant 0 : index
        %61 = vector.load %arg15[%c0_34, %c0_35] : memref<1x128xf32, #tpu.memory_space<vmem>>, vector<1x128xf32>
        tpu.vector_store %arg15[%c0_34, %c0_35], %60 {strides = array<i32>} : memref<1x128xf32, #tpu.memory_space<vmem>>, vector<1x128xf32>,
        %c0_36 = arith.constant 0 : index
        %c0_37 = arith.constant 0 : index
        %62 = vector.load %arg8[%c0_36, %c0_37] : memref<1x128xf32, #tpu.memory_space<vmem>>, vector<1x128xf32>
        %63 = arith.mulf %48, %60 : vector<1x128xf32>
        %64 = arith.subf %62, %63 : vector<1x128xf32>
        %c0_38 = arith.constant 0 : index
        %c0_39 = arith.constant 0 : index
        %65 = vector.load %arg16[%c0_38, %c0_39] : memref<1x128xf32, #tpu.memory_space<vmem>>, vector<1x128xf32>
        tpu.vector_store %arg16[%c0_38, %c0_39], %64 {strides = array<i32>} : memref<1x128xf32, #tpu.memory_space<vmem>>, vector<1x128xf32>,
      } else {
      }
    } else {
    }
    %c1_i32 = arith.constant 1 : i32
    %19 = arith.cmpi eq, %arg0, %c1_i32 : i32
    %20 = arith.extui %19 : i1 to i32
    %c0_i32_11 = arith.constant 0 : i32
    %21 = arith.cmpi ne, %20, %c0_i32_11 : i32
    scf.if %21 {
      %c0_12 = arith.constant 0 : index
      %c0_13 = arith.constant 0 : index
      %22 = vector.load %arg15[%c0_12, %c0_13] : memref<1x128xf32, #tpu.memory_space<vmem>>, vector<1x128xf32>
      %23 = vector.broadcast %22 : vector<1x128xf32> to vector<16x128xf32>
      %24 = arith.mulf %15, %23 : vector<16x128xf32>
      %c0_14 = arith.constant 0 : index
      %c0_15 = arith.constant 0 : index
      %25 = vector.load %arg16[%c0_14, %c0_15] : memref<1x128xf32, #tpu.memory_space<vmem>>, vector<1x128xf32>
      %26 = vector.broadcast %25 : vector<1x128xf32> to vector<16x128xf32>
      %27 = arith.addf %24, %26 : vector<16x128xf32>
      %c0_16 = arith.constant 0 : index
      %c0_17 = arith.constant 0 : index
      %28 = vector.load %arg9[%c0_16, %c0_17] : memref<128x128xf32, #tpu.memory_space<vmem>>, vector<128x128xf32>
      %cst_18 = arith.constant dense<0.000000e+00> : vector<16x128xf32>
      %29 = tpu.matmul %27, %28, %cst_18 {dimension_numbers = #tpu.dot_dimension_numbers<[1], [0], [0], [1], [0, 0, 1, 1], [], []>} : vector<16x128xf32>, vector<128x128xf32>, vector<16x128xf32> -> vector<16x128xf32>
      %c0_19 = arith.constant 0 : index
      %c0_20 = arith.constant 0 : index
      %30 = vector.load %arg10[%c0_19, %c0_20] : memref<1x128xf32, #tpu.memory_space<vmem>>, vector<1x128xf32>
      %31 = vector.broadcast %30 : vector<1x128xf32> to vector<16x128xf32>
      %32 = arith.addf %29, %31 : vector<16x128xf32>
      %cst_21 = arith.constant 0.000000e+00 : f32
      %33 = vector.broadcast %cst_21 : f32 to vector<16x128xf32>
      %34 = arith.cmpf ogt, %32, %33 : vector<16x128xf32>
      %cst_22 = arith.constant 1.000000e-01 : f32
      %35 = vector.broadcast %cst_22 : f32 to vector<16x128xf32>
      %36 = arith.mulf %35, %32 : vector<16x128xf32>
      %37 = arith.select %34, %32, %36 : vector<16x128xi1>, vector<16x128xf32>
      %c0_23 = arith.constant 0 : index
      %c0_24 = arith.constant 0 : index
      %38 = vector.load %arg11[%c0_23, %c0_24] : memref<16x128xf32, #tpu.memory_space<vmem>>, vector<16x128xf32>
      tpu.vector_store %arg11[%c0_23, %c0_24], %37 {strides = array<i32>} : memref<16x128xf32, #tpu.memory_space<vmem>>, vector<16x128xf32>,
      %c0_25 = arith.constant 0 : index
      %c0_26 = arith.constant 0 : index
      %39 = vector.load %arg17[%c0_25, %c0_26] : memref<8x128xf32, #tpu.memory_space<vmem>>, vector<8x128xf32>
      %c0_27 = arith.constant 0 : index
      %c0_28 = arith.constant 0 : index
      %40 = vector.load %arg4[%c0_27, %c0_28] : memref<16x8xf32, #tpu.memory_space<vmem>>, vector<16x8xf32>
      %cst_29 = arith.constant dense<0.000000e+00> : vector<8x128xf32>
      %41 = tpu.matmul %40, %37, %cst_29 {dimension_numbers = #tpu.dot_dimension_numbers<[0], [0], [1], [1], [0, 1, 1, 1], [], []>} : vector<16x8xf32>, vector<16x128xf32>, vector<8x128xf32> -> vector<8x128xf32>
      %42 = arith.addf %39, %41 : vector<8x128xf32>
      %c0_30 = arith.constant 0 : index
      %c0_31 = arith.constant 0 : index
      %43 = vector.load %arg17[%c0_30, %c0_31] : memref<8x128xf32, #tpu.memory_space<vmem>>, vector<8x128xf32>
      tpu.vector_store %arg17[%c0_30, %c0_31], %42 {strides = array<i32>} : memref<8x128xf32, #tpu.memory_space<vmem>>, vector<8x128xf32>,
      %c3_i32 = arith.constant 3 : i32
      %44 = arith.cmpi eq, %arg1, %c3_i32 : i32
      %45 = arith.extui %44 : i1 to i32
      %c0_i32_32 = arith.constant 0 : i32
      %46 = arith.cmpi ne, %45, %c0_i32_32 : i32
      scf.if %46 {
        %c0_33 = arith.constant 0 : index
        %c0_34 = arith.constant 0 : index
        %47 = vector.load %arg17[%c0_33, %c0_34] : memref<8x128xf32, #tpu.memory_space<vmem>>, vector<8x128xf32>
        %c0_35 = arith.constant 0 : index
        %c0_36 = arith.constant 0 : index
        %48 = vector.load %arg3[%c0_35, %c0_36] : memref<8x128xf32, #tpu.memory_space<vmem>>, vector<8x128xf32>
        %49 = arith.subf %47, %48 : vector<8x128xf32>
        %50 = arith.mulf %49, %49 : vector<8x128xf32>
        %51 = vector.shape_cast %50 : vector<8x128xf32> to vector<1x8x128xf32>
        %cst_37 = arith.constant dense<0.000000e+00> : vector<1xf32>
        %52 = vector.multi_reduction <add>, %51, %cst_37 [1, 2] : vector<1x8x128xf32> to vector<1xf32>
        %53 = vector.shape_cast %52 : vector<1xf32> to vector<1x1x1xf32>
        %54 = vector.extract %53[0, 0, 0] : f32 from vector<1x1x1xf32>
        %cst_38 = arith.constant 3.125000e-02 : f32
        %55 = arith.mulf %54, %cst_38 : f32
        %c0_39 = arith.constant 0 : index
        %56 = memref.load %arg12[%c0_39] : memref<1xf32, #tpu.memory_space<smem>>
        memref.store %55, %arg12[%c0_39] : memref<1xf32, #tpu.memory_space<smem>>
      } else {
      }
    } else {
    }
    return
  }
  func.func @transform_0(%arg0: i32, %arg1: i32) -> (i32, i32) {
    %c0_i32 = arith.constant 0 : i32
    %c0_i32_0 = arith.constant 0 : i32
    return %arg1, %c0_i32 : i32, i32
  }
  func.func @transform_1(%arg0: i32, %arg1: i32) -> (i32, i32) {
    %c0_i32 = arith.constant 0 : i32
    %c0_i32_0 = arith.constant 0 : i32
    %c0_i32_1 = arith.constant 0 : i32
    return %c0_i32, %c0_i32_0 : i32, i32
  }
  func.func @transform_2(%arg0: i32, %arg1: i32) -> (i32, i32) {
    %0 = arith.muli %arg0, %arg1 : i32
    %c0_i32 = arith.constant 0 : i32
    %c0_i32_0 = arith.constant 0 : i32
    return %0, %c0_i32 : i32, i32
  }
  func.func @transform_3(%arg0: i32, %arg1: i32) -> (i32, i32) {
    %c0_i32 = arith.constant 0 : i32
    %c0_i32_0 = arith.constant 0 : i32
    %c0_i32_1 = arith.constant 0 : i32
    return %c0_i32, %c0_i32_0 : i32, i32
  }
  func.func @transform_4(%arg0: i32, %arg1: i32) -> (i32, i32) {
    %c0_i32 = arith.constant 0 : i32
    %c0_i32_0 = arith.constant 0 : i32
    %c0_i32_1 = arith.constant 0 : i32
    return %c0_i32, %c0_i32_0 : i32, i32
  }
  func.func @transform_5(%arg0: i32, %arg1: i32) -> (i32, i32) {
    %c0_i32 = arith.constant 0 : i32
    %c0_i32_0 = arith.constant 0 : i32
    %c0_i32_1 = arith.constant 0 : i32
    return %c0_i32, %c0_i32_0 : i32, i32
  }
  func.func @transform_6(%arg0: i32, %arg1: i32) -> (i32, i32) {
    %c0_i32 = arith.constant 0 : i32
    %c0_i32_0 = arith.constant 0 : i32
    %c0_i32_1 = arith.constant 0 : i32
    return %c0_i32, %c0_i32_0 : i32, i32
  }
  func.func @transform_7(%arg0: i32, %arg1: i32) -> (i32, i32) {
    %c0_i32 = arith.constant 0 : i32
    %c0_i32_0 = arith.constant 0 : i32
    %c0_i32_1 = arith.constant 0 : i32
    return %c0_i32, %c0_i32_0 : i32, i32
  }
  func.func @transform_8(%arg0: i32, %arg1: i32) -> (i32, i32) {
    %c0_i32 = arith.constant 0 : i32
    %c0_i32_0 = arith.constant 0 : i32
    %c0_i32_1 = arith.constant 0 : i32
    return %c0_i32, %c0_i32_0 : i32, i32
  }
  func.func @transform_9(%arg0: i32, %arg1: i32) -> (i32, i32) {
    %0 = arith.muli %arg0, %arg1 : i32
    %c0_i32 = arith.constant 0 : i32
    %c0_i32_0 = arith.constant 0 : i32
    return %0, %c0_i32 : i32, i32
  }
  func.func @transform_10(%arg0: i32, %arg1: i32) -> i32 {
    %c0_i32 = arith.constant 0 : i32
    %c0_i32_0 = arith.constant 0 : i32
    return %c0_i32 : i32
  }
}

</mosaic_0001>

<llo_original>
// kernel: tpu_custom_call.1
$region0: #{tpu_custom_call.1}
  #allocation0 [shape = 'u32[]', space=smem, size = 0x4, offset = 0x4, fixed_abs, tag = 'smem constant byte address 0x4 - core index']
  #allocation1 [shape = 'u32[72,128]{1,0:T(1,128)}', space=vmem, size = 0x9000, scoped, tag = 'internal scratch']
  #allocation2 [shape = 'f32[1,128]{1,0:T(1,128)}', space=vmem, size = 0x200, scoped, tag = 'scratch operand']
  #allocation3 [shape = 'f32[1,128]{1,0:T(1,128)}', space=vmem, size = 0x200, scoped, tag = 'scratch operand']
  #allocation4 [shape = 'f32[1,128]{1,0:T(1,128)}', space=vmem, size = 0x200, scoped, tag = 'scratch operand']
  #allocation5 [shape = 'f32[1,128]{1,0:T(1,128)}', space=vmem, size = 0x200, scoped, tag = 'scratch operand']
  #allocation6 [shape = 'f32[8,128]{1,0:T(8,128)}', space=vmem, size = 0x1000, scoped, tag = 'scratch operand']
  %s0 = inlined_call_operand.vmem [shape: f32[64,128], index: 0, kind: input, shape index: {}]
  %s1 = inlined_call_operand.vmem [shape: f32[8,128], index: 1, kind: input, shape index: {}]
  %s2 = inlined_call_operand.vmem [shape: f32[64,8], index: 2, kind: input, shape index: {}]
  %s3 = inlined_call_operand.hbm [shape: f32[128,128], index: 3, kind: input, shape index: {}]
  %s4 = inlined_call_operand.vmem [shape: f32[1,128], index: 4, kind: input, shape index: {}]
  %s5 = inlined_call_operand.vmem [shape: f32[1,128], index: 5, kind: input, shape index: {}]
  %s6 = inlined_call_operand.vmem [shape: f32[1,128], index: 6, kind: input, shape index: {}]
  %s7 = inlined_call_operand.hbm [shape: f32[128,128], index: 7, kind: input, shape index: {}]
  %s8 = inlined_call_operand.vmem [shape: f32[1,128], index: 8, kind: input, shape index: {}]
  %s9 = inlined_call_operand.hbm [shape: f32[64,128], index: 9, kind: output, shape index: {0}]
  %s10 = inlined_call_operand.hbm [shape: f32[1], index: 10, kind: output, shape index: {1}]
  %11 = xla_tuple %s9, %s10
  %s12 = sld [smem:[#allocation0]]
  $region105: #{tpu_custom_call.1} parent=0
    _
  %s14 = ssub.s32 1, %s12
  %s15 = scalar_select 0, %s14, %s12
  $region1: #{tpu_custom_call.1} parent=0
    #allocation7 [shape = 'u8[65536]{0}', space=vmem, size = 0x10000, scoped, tag = 'input window, operand 3, single buffered']
    #allocation8 [shape = 's32[2]{0}', space=sflag, size = 0x8, scoped, tag = 'scoped memory for tpu_custom_call.1']
    #allocation9 [shape = 's32[2]{0}', space=sflag, size = 0x8, scoped, tag = 'scoped memory for tpu_custom_call.1']
    #allocation10 [shape = 's32[2]{0}', space=sflag, size = 0x8, scoped, tag = 'scoped memory for tpu_custom_call.1']
    #allocation11 [shape = 'u8[65536]{0}', space=vmem, size = 0x10000, scoped, tag = 'input window, operand 7, single buffered']
    #allocation12 [shape = 's32[1]{0}', space=sflag, size = 0x4, scoped, tag = 'scoped memory for tpu_custom_call.1']
    #allocation13 [shape = 'u8[16384]{0}', space=vmem, size = 0x4000, scoped, tag = 'output window, operand 0']
    #allocation14 [shape = 'u8[512]{0}', space=smem, size = 0x200, scoped, tag = 'output window, operand 1, single buffered']
    %16 = vsyncpa [#allocation8], 0
    %17 = vsyncpa [#allocation12], 0
    %18 = vsyncpa [#allocation9], 0
    %s19 = scalar_lea.sflag [#allocation9], 1
    %20 = vsyncpa %s19, 0
    %21 = vsyncpa [#allocation10], 0
    loop: start=0, step=1, limit=10
    $region2: #{tpu_custom_call.1} parent=1 // loop_pre_header
      _
    $region3: #{tpu_custom_call.1} parent=1 // loop_header
      %s23 = sphi 0, %s27
      %p24 = scmp.ge.s32.totalorder %s23, 10
      %s30 = sphi 0, %s42
      %s31 = sphi 0, %s38
      %s32 = sphi 0, %s30
      %s33 = sphi 0, %s31
      %s34 = sphi 0, %s32
      %s35 = sphi 0, %s33
      %s45 = sphi 0, %s47
      %s48 = sphi 0, %s45
      %s49 = sphi 0, %s48
      %s65 = sphi 0, %s49
      %s69 = sphi 0, %s69
      %s71 = sphi 0, %s69
      %s72 = sphi 0, %s71
      %s86 = sphi 0, %s72
      %s94 = sphi 0, %s96
      %s97 = sphi 0, %s94
      %s98 = sphi 0, %s97
      %s114 = sphi 0, %s98
      %s118 = sphi 0, %s118
      %s120 = sphi 0, %s118
      %s121 = sphi 0, %s120
      %s135 = sphi 0, %s121
      %s139 = sphi 0, %s139
      %s141 = sphi 0, %s139
      %s142 = sphi 0, %s141
      %s156 = sphi 0, %s142
      %s160 = sphi 0, %s160
      %s162 = sphi 0, %s160
      %s163 = sphi 0, %s162
      %s177 = sphi 0, %s163
      %s181 = sphi 0, %s181
      %s183 = sphi 0, %s181
      %s184 = sphi 0, %s183
      %s198 = sphi 0, %s184
      %s202 = sphi 0, %s202
      %s204 = sphi 0, %s202
      %s205 = sphi 0, %s204
      %s219 = sphi 0, %s205
      %s223 = sphi 0, %s223
      %s225 = sphi 0, %s223
      %s226 = sphi 0, %s225
      %s240 = sphi 0, %s226
      %s248 = sphi 0, %s250
      %s251 = sphi 0, %s248
      %s252 = sphi 0, %s251
      %s268 = sphi 0, %s252
      %s272 = sphi 0, %s272
      %s274 = sphi 0, %s272
      %s275 = sphi 0, %s274
      %s289 = sphi 0, %s275
    $region4: #{tpu_custom_call.1} parent=1 // loop_header_branch
      %26 = sbr.rel (%p24) target = $region8
    $region5: #{tpu_custom_call.1} parent=1 // loop_body
      %s28 = ssub.s32 %s23, 1
      %s29 = ssub.s32 %s23, 2
      %s36 = sadd.s32 1, %s31
      %p37 = scmp.ge.s32.totalorder %s36, 4
      %s38 = scalar_select %p37, 0, %s36
      %s39 = sadd.s32 1, %s30
      %s40 = scalar_select %p37, %s39, %s30
      %p41 = scmp.ge.s32.totalorder %s40, 2
      %s42 = scalar_select %p41, 0, %s40
      %s43 = ssub.s32 %s31, %s38
      %p44 = scmp.eq.s32.totalorder %s43, 0
      %s46 = sadd.s32 %s45, 1
      %s47 = scalar_select %p44, %s45, %s46
      %p50 = pneg %p44
      %p51 = scmp.eq.s32.totalorder %s23, 7
      %p52 = por %p50, %p51
      %p53 = scmp.ne.s32.totalorder %s45, %s48
      %p54 = scmp.eq.s32.totalorder %s23, 0
      %p55 = por %p53, %p54
      %p56 = scmp.ne.s32.totalorder %s45, %s48
      %p57 = scmp.eq.s32.totalorder %s28, 7
      %p58 = por %p56, %p57
      %p59 = scmp.ne.s32.totalorder %s48, %s49
      %p60 = scmp.eq.s32.totalorder %s28, 0
      %p61 = por %p59, %p60
      %p62 = scmp.ne.s32.totalorder %s48, %s49
      %p63 = scmp.eq.s32.totalorder %s29, 7
      %p64 = por %p62, %p63
      %p66 = scmp.ne.s32.totalorder %s49, %s65
      %p67 = scmp.eq.s32.totalorder %s29, 0
      %p68 = por %p66, %p67
      %s70 = sadd.s32 %s69, 1
      %p73 = scmp.eq.s32.totalorder %s23, 7
      %p74 = scmp.ne.s32.totalorder %s69, %s71
      %p75 = scmp.eq.s32.totalorder %s23, 0
      %p76 = por %p74, %p75
      %p77 = scmp.ne.s32.totalorder %s69, %s71
      %p78 = scmp.eq.s32.totalorder %s28, 7
      %p79 = por %p77, %p78
      %p80 = scmp.ne.s32.totalorder %s71, %s72
      %p81 = scmp.eq.s32.totalorder %s28, 0
      %p82 = por %p80, %p81
      %p83 = scmp.ne.s32.totalorder %s71, %s72
      %p84 = scmp.eq.s32.totalorder %s29, 7
      %p85 = por %p83, %p84
      %p87 = scmp.ne.s32.totalorder %s72, %s86
      %p88 = scmp.eq.s32.totalorder %s29, 0
      %p89 = por %p87, %p88
      %s90 = smul.u32 %s30, %s31
      %s91 = smul.u32 %s42, %s38
      %s92 = ssub.s32 %s90, %s91
      %p93 = scmp.eq.s32.totalorder %s92, 0
      %s95 = sadd.s32 %s94, 1
      %s96 = scalar_select %p93, %s94, %s95
      %p99 = pneg %p93
      %p100 = scmp.eq.s32.totalorder %s23, 7
      %p101 = por %p99, %p100
      %p102 = scmp.ne.s32.totalorder %s94, %s97
      %p103 = scmp.eq.s32.totalorder %s23, 0
      %p104 = por %p102, %p103
      %p105 = scmp.ne.s32.totalorder %s94, %s97
      %p106 = scmp.eq.s32.totalorder %s28, 7
      %p107 = por %p105, %p106
      %p108 = scmp.ne.s32.totalorder %s97, %s98
      %p109 = scmp.eq.s32.totalorder %s28, 0
      %p110 = por %p108, %p109
      %p111 = scmp.ne.s32.totalorder %s97, %s98
      %p112 = scmp.eq.s32.totalorder %s29, 7
      %p113 = por %p111, %p112
      %p115 = scmp.ne.s32.totalorder %s98, %s114
      %p116 = scmp.eq.s32.totalorder %s29, 0
      %p117 = por %p115, %p116
      %s119 = sadd.s32 %s118, 1
      %p122 = scmp.eq.s32.totalorder %s23, 7
      %p123 = scmp.ne.s32.totalorder %s118, %s120
      %p124 = scmp.eq.s32.totalorder %s23, 0
      %p125 = por %p123, %p124
      %p126 = scmp.ne.s32.totalorder %s118, %s120
      %p127 = scmp.eq.s32.totalorder %s28, 7
      %p128 = por %p126, %p127
      %p129 = scmp.ne.s32.totalorder %s120, %s121
      %p130 = scmp.eq.s32.totalorder %s28, 0
      %p131 = por %p129, %p130
      %p132 = scmp.ne.s32.totalorder %s120, %s121
      %p133 = scmp.eq.s32.totalorder %s29, 7
      %p134 = por %p132, %p133
      %p136 = scmp.ne.s32.totalorder %s121, %s135
      %p137 = scmp.eq.s32.totalorder %s29, 0
      %p138 = por %p136, %p137
      %s140 = sadd.s32 %s139, 1
      %p143 = scmp.eq.s32.totalorder %s23, 7
      %p144 = scmp.ne.s32.totalorder %s139, %s141
      %p145 = scmp.eq.s32.totalorder %s23, 0
      %p146 = por %p144, %p145
      %p147 = scmp.ne.s32.totalorder %s139, %s141
      %p148 = scmp.eq.s32.totalorder %s28, 7
      %p149 = por %p147, %p148
      %p150 = scmp.ne.s32.totalorder %s141, %s142
      %p151 = scmp.eq.s32.totalorder %s28, 0
      %p152 = por %p150, %p151
      %p153 = scmp.ne.s32.totalorder %s141, %s142
      %p154 = scmp.eq.s32.totalorder %s29, 7
      %p155 = por %p153, %p154
      %p157 = scmp.ne.s32.totalorder %s142, %s156
      %p158 = scmp.eq.s32.totalorder %s29, 0
      %p159 = por %p157, %p158
      %s161 = sadd.s32 %s160, 1
      %p164 = scmp.eq.s32.totalorder %s23, 7
      %p165 = scmp.ne.s32.totalorder %s160, %s162
      %p166 = scmp.eq.s32.totalorder %s23, 0
      %p167 = por %p165, %p166
      %p168 = scmp.ne.s32.totalorder %s160, %s162
      %p169 = scmp.eq.s32.totalorder %s28, 7
      %p170 = por %p168, %p169
      %p171 = scmp.ne.s32.totalorder %s162, %s163
      %p172 = scmp.eq.s32.totalorder %s28, 0
      %p173 = por %p171, %p172
      %p174 = scmp.ne.s32.totalorder %s162, %s163
      %p175 = scmp.eq.s32.totalorder %s29, 7
      %p176 = por %p174, %p175
      %p178 = scmp.ne.s32.totalorder %s163, %s177
      %p179 = scmp.eq.s32.totalorder %s29, 0
      %p180 = por %p178, %p179
      %s182 = sadd.s32 %s181, 1
      %p185 = scmp.eq.s32.totalorder %s23, 7
      %p186 = scmp.ne.s32.totalorder %s181, %s183
      %p187 = scmp.eq.s32.totalorder %s23, 0
      %p188 = por %p186, %p187
      %p189 = scmp.ne.s32.totalorder %s181, %s183
      %p190 = scmp.eq.s32.totalorder %s28, 7
      %p191 = por %p189, %p190
      %p192 = scmp.ne.s32.totalorder %s183, %s184
      %p193 = scmp.eq.s32.totalorder %s28, 0
      %p194 = por %p192, %p193
      %p195 = scmp.ne.s32.totalorder %s183, %s184
      %p196 = scmp.eq.s32.totalorder %s29, 7
      %p197 = por %p195, %p196
      %p199 = scmp.ne.s32.totalorder %s184, %s198
      %p200 = scmp.eq.s32.totalorder %s29, 0
      %p201 = por %p199, %p200
      %s203 = sadd.s32 %s202, 1
      %p206 = scmp.eq.s32.totalorder %s23, 7
      %p207 = scmp.ne.s32.totalorder %s202, %s204
      %p208 = scmp.eq.s32.totalorder %s23, 0
      %p209 = por %p207, %p208
      %p210 = scmp.ne.s32.totalorder %s202, %s204
      %p211 = scmp.eq.s32.totalorder %s28, 7
      %p212 = por %p210, %p211
      %p213 = scmp.ne.s32.totalorder %s204, %s205
      %p214 = scmp.eq.s32.totalorder %s28, 0
      %p215 = por %p213, %p214
      %p216 = scmp.ne.s32.totalorder %s204, %s205
      %p217 = scmp.eq.s32.totalorder %s29, 7
      %p218 = por %p216, %p217
      %p220 = scmp.ne.s32.totalorder %s205, %s219
      %p221 = scmp.eq.s32.totalorder %s29, 0
      %p222 = por %p220, %p221
      %s224 = sadd.s32 %s223, 1
      %p227 = scmp.eq.s32.totalorder %s23, 7
      %p228 = scmp.ne.s32.totalorder %s223, %s225
      %p229 = scmp.eq.s32.totalorder %s23, 0
      %p230 = por %p228, %p229
      %p231 = scmp.ne.s32.totalorder %s223, %s225
      %p232 = scmp.eq.s32.totalorder %s28, 7
      %p233 = por %p231, %p232
      %p234 = scmp.ne.s32.totalorder %s225, %s226
      %p235 = scmp.eq.s32.totalorder %s28, 0
      %p236 = por %p234, %p235
      %p237 = scmp.ne.s32.totalorder %s225, %s226
      %p238 = scmp.eq.s32.totalorder %s29, 7
      %p239 = por %p237, %p238
      %p241 = scmp.ne.s32.totalorder %s226, %s240
      %p242 = scmp.eq.s32.totalorder %s29, 0
      %p243 = por %p241, %p242
      %s244 = smul.u32 %s30, %s31
      %s245 = smul.u32 %s42, %s38
      %s246 = ssub.s32 %s244, %s245
      %p247 = scmp.eq.s32.totalorder %s246, 0
      %s249 = sadd.s32 %s248, 1
      %s250 = scalar_select %p247, %s248, %s249
      %p253 = pneg %p247
      %p254 = scmp.eq.s32.totalorder %s23, 7
      %p255 = por %p253, %p254
      %p256 = scmp.ne.s32.totalorder %s248, %s251
      %p257 = scmp.eq.s32.totalorder %s23, 0
      %p258 = por %p256, %p257
      %p259 = scmp.ne.s32.totalorder %s248, %s251
      %p260 = scmp.eq.s32.totalorder %s28, 7
      %p261 = por %p259, %p260
      %p262 = scmp.ne.s32.totalorder %s251, %s252
      %p263 = scmp.eq.s32.totalorder %s28, 0
      %p264 = por %p262, %p263
      %p265 = scmp.ne.s32.totalorder %s251, %s252
      %p266 = scmp.eq.s32.totalorder %s29, 7
      %p267 = por %p265, %p266
      %p269 = scmp.ne.s32.totalorder %s252, %s268
      %p270 = scmp.eq.s32.totalorder %s29, 0
      %p271 = por %p269, %p270
      %s273 = sadd.s32 %s272, 1
      %p276 = scmp.eq.s32.totalorder %s23, 7
      %p277 = scmp.ne.s32.totalorder %s272, %s274
      %p278 = scmp.eq.s32.totalorder %s23, 0
      %p279 = por %p277, %p278
      %p280 = scmp.ne.s32.totalorder %s272, %s274
      %p281 = scmp.eq.s32.totalorder %s28, 7
      %p282 = por %p280, %p281
      %p283 = scmp.ne.s32.totalorder %s274, %s275
      %p284 = scmp.eq.s32.totalorder %s28, 0
      %p285 = por %p283, %p284
      %p286 = scmp.ne.s32.totalorder %s274, %s275
      %p287 = scmp.eq.s32.totalorder %s29, 7
      %p288 = por %p286, %p287
      %p290 = scmp.ne.s32.totalorder %s275, %s289
      %p291 = scmp.eq.s32.totalorder %s29, 0
      %p292 = por %p290, %p291
      %p293 = scmp.le.s32.totalorder 1, %s23
      %p294 = scmp.lt.s32.totalorder %s23, 9
      %p295 = pnand %p293, %p294
      %p296 = pneg %p295
      // Predicated region
      $region9: #{tpu_custom_call.1} parent=5 // pred_check
        _
      $region10: #{tpu_custom_call.1} parent=5 // pred_check_branch
        %298 = sbr.rel (%p295) target = $region12
      $region11: #{tpu_custom_call.1} parent=5 // pred_region
        %s299 = ssub.s32 %s23, 1
        // Predicated region
        $region13: #{tpu_custom_call.1} parent=11 // pred_check
          %p300 = pneg %p82
        $region14: #{tpu_custom_call.1} parent=11 // pred_check_branch
          %302 = sbr.rel (%p300) target = $region16
        $region15: #{tpu_custom_call.1} parent=11 // pred_region
          _
        $region16: #{tpu_custom_call.1} parent=11 // pred_fallthru
          _
        // Predicated region
        $region17: #{tpu_custom_call.1} parent=11 // pred_check
          %p303 = pneg %p131
        $region18: #{tpu_custom_call.1} parent=11 // pred_check_branch
          %305 = sbr.rel (%p303) target = $region20
        $region19: #{tpu_custom_call.1} parent=11 // pred_region
          %307 = vsyncadd [#allocation8], 0
          %s308 = sshll.u32 %s3, 4
          %s309 = int_to_ptr.hbm [resolvable:$true] %s308
          %s310 = sshll.u32 [#allocation7], 4
          %s311 = int_to_ptr.vmem [resolvable:$true] %s310
          %316 = dma.hbm_to_vmem [thread:$0]  %s309, 2048, %s311, [#allocation8], 128, 128, 8
        $region20: #{tpu_custom_call.1} parent=11 // pred_fallthru
          _
        // Predicated region
        $region21: #{tpu_custom_call.1} parent=11 // pred_check
          %p317 = pneg %p152
        $region22: #{tpu_custom_call.1} parent=11 // pred_check_branch
          %319 = sbr.rel (%p317) target = $region24
        $region23: #{tpu_custom_call.1} parent=11 // pred_region
          _
        $region24: #{tpu_custom_call.1} parent=11 // pred_fallthru
          _
        // Predicated region
        $region25: #{tpu_custom_call.1} parent=11 // pred_check
          %p320 = pneg %p173
        $region26: #{tpu_custom_call.1} parent=11 // pred_check_branch
          %322 = sbr.rel (%p320) target = $region28
        $region27: #{tpu_custom_call.1} parent=11 // pred_region
          _
        $region28: #{tpu_custom_call.1} parent=11 // pred_fallthru
          _
        // Predicated region
        $region29: #{tpu_custom_call.1} parent=11 // pred_check
          %p323 = pneg %p194
        $region30: #{tpu_custom_call.1} parent=11 // pred_check_branch
          %325 = sbr.rel (%p323) target = $region32
        $region31: #{tpu_custom_call.1} parent=11 // pred_region
          _
        $region32: #{tpu_custom_call.1} parent=11 // pred_fallthru
          _
        // Predicated region
        $region33: #{tpu_custom_call.1} parent=11 // pred_check
          %p326 = pneg %p215
        $region34: #{tpu_custom_call.1} parent=11 // pred_check_branch
          %328 = sbr.rel (%p326) target = $region36
        $region35: #{tpu_custom_call.1} parent=11 // pred_region
          %330 = vsyncadd [#allocation12], 0
          %s331 = sshll.u32 %s7, 4
          %s332 = int_to_ptr.hbm [resolvable:$true] %s331
          %s333 = sshll.u32 [#allocation11], 4
          %s334 = int_to_ptr.vmem [resolvable:$true] %s333
          %339 = dma.hbm_to_vmem [thread:$0]  %s332, 2048, %s334, [#allocation12], 128, 128, 8
        $region36: #{tpu_custom_call.1} parent=11 // pred_fallthru
          _
        // Predicated region
        $region37: #{tpu_custom_call.1} parent=11 // pred_check
          %p340 = pneg %p236
        $region38: #{tpu_custom_call.1} parent=11 // pred_check_branch
          %342 = sbr.rel (%p340) target = $region40
        $region39: #{tpu_custom_call.1} parent=11 // pred_region
          _
        $region40: #{tpu_custom_call.1} parent=11 // pred_fallthru
          _
      $region12: #{tpu_custom_call.1} parent=5 // pred_fallthru
        _
      %p343 = scmp.lt.s32.totalorder %s23, 8
      // Predicated region
      $region41: #{tpu_custom_call.1} parent=5 // pred_check
        %p344 = pneg %p343
      $region42: #{tpu_custom_call.1} parent=5 // pred_check_branch
        %346 = sbr.rel (%p344) target = $region44
      $region43: #{tpu_custom_call.1} parent=5 // pred_region
        // Predicated region
        $region45: #{tpu_custom_call.1} parent=43 // pred_check
          %p347 = pneg %p55
        $region46: #{tpu_custom_call.1} parent=43 // pred_check_branch
          %349 = sbr.rel (%p347) target = $region48
        $region47: #{tpu_custom_call.1} parent=43 // pred_region
          %s350 = smul.u32 2, %s31
          %p351 = scmp.lt.s32.totalorder %s350, 7
          %s352 = scalar_select %p351, %s350, 7
          %s353 = smul.addr %s352, 8
          %s354 = scalar_lea.vmem %s0, %s353
          %s355 = smul.u32 2, %s31
        $region48: #{tpu_custom_call.1} parent=43 // pred_fallthru
          _
        // Predicated region
        $region49: #{tpu_custom_call.1} parent=43 // pred_check
          %p356 = pneg %p104
        $region50: #{tpu_custom_call.1} parent=43 // pred_check_branch
          %358 = sbr.rel (%p356) target = $region52
        $region51: #{tpu_custom_call.1} parent=43 // pred_region
          %s359 = smul.u32 %s30, %s31
          %s360 = smul.u32 2, %s359
          %p361 = scmp.lt.s32.totalorder %s360, 7
          %s362 = scalar_select %p361, %s360, 7
          %s363 = smul.addr %s362, 8
          %s364 = scalar_lea.vmem %s2, %s363
          %s365 = smul.u32 %s30, %s31
          %s366 = smul.u32 2, %s365
        $region52: #{tpu_custom_call.1} parent=43 // pred_fallthru
          _
      $region44: #{tpu_custom_call.1} parent=5 // pred_fallthru
        _
      %p367 = scmp.le.s32.totalorder 1, %s23
      %p368 = scmp.lt.s32.totalorder %s23, 9
      %p369 = pnand %p367, %p368
      %p370 = pneg %p369
      // Predicated region
      $region53: #{tpu_custom_call.1} parent=5 // pred_check
        _
      $region54: #{tpu_custom_call.1} parent=5 // pred_check_branch
        %372 = sbr.rel (%p369) target = $region56
      $region55: #{tpu_custom_call.1} parent=5 // pred_region
        %s373 = ssub.s32 %s23, 1
        // Predicated region
        $region57: #{tpu_custom_call.1} parent=55 // pred_check
          %p374 = pneg %p131
        $region58: #{tpu_custom_call.1} parent=55 // pred_check_branch
          %376 = sbr.rel (%p374) target = $region60
        $region59: #{tpu_custom_call.1} parent=55 // pred_region
          %378 = dma.done [#allocation8], 2048
        $region60: #{tpu_custom_call.1} parent=55 // pred_fallthru
          _
        // Predicated region
        $region61: #{tpu_custom_call.1} parent=55 // pred_check
          %p379 = pneg %p215
        $region62: #{tpu_custom_call.1} parent=55 // pred_check_branch
          %381 = sbr.rel (%p379) target = $region64
        $region63: #{tpu_custom_call.1} parent=55 // pred_region
          %383 = dma.done [#allocation12], 2048
        $region64: #{tpu_custom_call.1} parent=55 // pred_fallthru
          _
        %s384 = smul.u32 2, %s33
        %p385 = scmp.lt.s32.totalorder %s384, 7
        %s386 = scalar_select %p385, %s384, 7
        %s387 = smul.addr %s386, 8
        %s388 = scalar_lea.vmem %s0, %s387
        %p389 = pneg %p61
        %p390 = pneg %p58
        %p391 = pneg %p82
        %p392 = pneg %p79
        %s393 = smul.u32 %s32, %s33
        %s394 = smul.u32 2, %s393
        %p395 = scmp.lt.s32.totalorder %s394, 7
        %s396 = scalar_select %p395, %s394, 7
        %s397 = smul.addr %s396, 8
        %s398 = scalar_lea.vmem %s2, %s397
        %p399 = pneg %p110
        %p400 = pneg %p107
        %p401 = pneg %p131
        %p402 = pneg %p128
        %p403 = pneg %p152
        %p404 = pneg %p149
        %p405 = pneg %p173
        %p406 = pneg %p170
        %p407 = pneg %p194
        %p408 = pneg %p191
        %p409 = pneg %p215
        %p410 = pneg %p212
        %p411 = pneg %p236
        %p412 = pneg %p233
        %p413 = pneg %p264
        %p414 = pneg %p261
        %s415 = sand.u32 %s251, 1
        %s416 = scalar_lea.sflag [#allocation9], %s415
        %s417 = sand.u32 %s251, 1
        %s418 = smul.addr %s417, 16
        %s419 = scalar_lea.vmem [#allocation13], %s418
        %p420 = pneg %p285
        %p421 = pneg %p282
        %s422 = smul.u32 2, %s33
        %p423 = scmp.lt.s32.totalorder %s422, 7
        %s424 = scalar_select %p423, %s422, 7
        %s425 = smul.addr %s424, 8
        %s426 = scalar_lea.vmem %s0, %s425
        %s427 = smul.u32 2, %s33
        %s428 = smul.u32 %s32, %s33
        %s429 = smul.u32 2, %s428
        %p430 = scmp.lt.s32.totalorder %s429, 7
        %s431 = scalar_select %p430, %s429, 7
        %s432 = smul.addr %s431, 8
        %s433 = scalar_lea.vmem %s2, %s432
        %s434 = smul.u32 %s32, %s33
        %s435 = smul.u32 2, %s434
        %s436 = smul.u32 %s32, %s33
        %s437 = smul.u32 2, %s436
        %p438 = scmp.eq.s32.totalorder %s32, 0
        %p439 = scmp.eq.s32.totalorder %s33, 0
        %p440 = pnand %p438, %p439
        %p441 = pneg %p440
        // Predicated region
        $region65: #{tpu_custom_call.1} parent=55 // pred_check
          _
        $region66: #{tpu_custom_call.1} parent=55 // pred_check_branch
          %443 = sbr.rel (%p440) target = $region68
        $region67: #{tpu_custom_call.1} parent=55 // pred_region
          %444 = vst [vmem:[#allocation2] sm:$0x1] 0.0
          %445 = vst [vmem:[#allocation3] sm:$0x1] 0.0
          %446 = vst [vmem:[#allocation6] sm:$0xff] 0.0
        $region68: #{tpu_custom_call.1} parent=55 // pred_fallthru
          _
        %v447 = vld [vmem:[%s426] sm:$0xff]
        %v448 = vld [vmem:[%s426 + $0x8] sm:$0xff]
        %v449 = vld [vmem:[#allocation7] sm:$0xff]
        %v450 = vld [vmem:[#allocation7 + $0x8] sm:$0xff]
        %v451 = vld [vmem:[#allocation7 + $0x10] sm:$0xff]
        %v452 = vld [vmem:[#allocation7 + $0x18] sm:$0xff]
        %v453 = vld [vmem:[#allocation7 + $0x20] sm:$0xff]
        %v454 = vld [vmem:[#allocation7 + $0x28] sm:$0xff]
        %v455 = vld [vmem:[#allocation7 + $0x30] sm:$0xff]
        %v456 = vld [vmem:[#allocation7 + $0x38] sm:$0xff]
        %v457 = vld [vmem:[#allocation7 + $0x40] sm:$0xff]
        %v458 = vld [vmem:[#allocation7 + $0x48] sm:$0xff]
        %v459 = vld [vmem:[#allocation7 + $0x50] sm:$0xff]
        %v460 = vld [vmem:[#allocation7 + $0x58] sm:$0xff]
        %v461 = vld [vmem:[#allocation7 + $0x60] sm:$0xff]
        %v462 = vld [vmem:[#allocation7 + $0x68] sm:$0xff]
        %v463 = vld [vmem:[#allocation7 + $0x70] sm:$0xff]
        %v464 = vld [vmem:[#allocation7 + $0x78] sm:$0xff]
        %v465 = vld [vmem:[%s4] sm:$0x1]
        %v467 = vperm.slane %v465, 0
        %469 = vmatpush.msra.mxu0 %v464
        %470 = vmatpush.msra.mxu0 %v463
        %471 = vmatpush.msra.mxu0 %v462
        %472 = vmatpush.msra.mxu0 %v461
        %473 = vmatpush.msra.mxu0 %v460
        %474 = vmatpush.msra.mxu0 %v459
        %475 = vmatpush.msra.mxu0 %v458
        %476 = vmatpush.msra.mxu0 %v457
        %477 = vmatpush.msra.mxu0 %v456
        %478 = vmatpush.msra.mxu0 %v455
        %479 = vmatpush.msra.mxu0 %v454
        %480 = vmatpush.msra.mxu0 %v453
        %481 = vmatpush.msra.mxu0 %v452
        %482 = vmatpush.msra.mxu0 %v451
        %483 = vmatpush.msra.mxu0 %v450
        %484 = vmatpush.msra.mxu0 %v449
        %485 = vmatmul.f32.gmra.mxu0 %v447
        %v486 = vpop.f32.mrf.mxu0
        %v487 = vadd.f32 %v467, %v486
        %488 = vmatmul.f32.gmra.mxu0 %v448
        %v489 = vpop.f32.mrf.mxu0
        %v490 = vadd.f32 %v467, %v489
        %491 = vdwg.mxu0
        %vm492 = vcmp.gt.f32.partialorder %v487, 0.0
        %vm493 = vcmp.gt.f32.partialorder %v490, 0.0
        %v494 = vmul.f32 %v487, 0.1
        %v495 = vmul.f32 %v490, 0.1
        %v496 = vsel %vm492, %v487, %v494
        %v497 = vsel %vm493, %v490, %v495
        // Predicated region
        $region69: #{tpu_custom_call.1} parent=55 // pred_check
          %p498 = pneg %p438
        $region70: #{tpu_custom_call.1} parent=55 // pred_check_branch
          %500 = sbr.rel (%p498) target = $region72
        $region71: #{tpu_custom_call.1} parent=55 // pred_region
          %s501 = smul.u32 %s33, 16
          %v502 = vlaneseq
          %v503 = vshrl.u32 %v502, 7
          %v504 = vadd.s32 %v503, 8
          %v505 = vstv %s501
          %v506 = vadd.s32 %v505, %v503
          %v507 = vadd.s32 %v505, %v504
          %vm508 = vcmp.lt.s32.totalorder %v506, 64
          %vm509 = vcmp.lt.s32.totalorder %v507, 64
          %v510 = vsel %vm508, 1, 0
          %v511 = vsel %vm509, 1, 0
          %vm512 = vcmp.eq.s32.totalorder %v510, 1
          %vm513 = vcmp.eq.s32.totalorder %v511, 1
          %v514 = vsel %vm512, %v496, 0.0
          %v515 = vsel %vm513, %v497, 0.0
          %v516 = vld [vmem:[#allocation2] sm:$0x1]
          %v517 = vadd.f32 %v514, %v515
          %v518 = vrot.slane %v517, 4
          %v519 = vadd.f32 %v517, %v518
          %v520 = vrot.slane %v519, 2
          %v521 = vadd.f32 %v519, %v520
          %v522 = vrot.slane %v521, 1
          %v523 = vadd.f32 %v521, %v522
          %v524 = vadd.f32 %v516, %v523
          %525 = vst [vmem:[#allocation2] sm:$0x1] %v524
          %v526 = vld [vmem:[#allocation3] sm:$0x1]
          %v527 = vmul.f32 %v514, %v514
          %v528 = vmul.f32 %v515, %v515
          %v529 = vadd.f32 %v527, %v528
          %v530 = vrot.slane %v529, 4
          %v531 = vadd.f32 %v529, %v530
          %v532 = vrot.slane %v531, 2
          %v533 = vadd.f32 %v531, %v532
          %v534 = vrot.slane %v533, 1
          %v535 = vadd.f32 %v533, %v534
          %v536 = vadd.f32 %v526, %v535
          %537 = vst [vmem:[#allocation3] sm:$0x1] %v536
          %p538 = scmp.eq.s32.totalorder %s33, 3
          // Predicated region
          $region73: #{tpu_custom_call.1} parent=71 // pred_check
            %p539 = pneg %p538
          $region74: #{tpu_custom_call.1} parent=71 // pred_check_branch
            %541 = sbr.rel (%p539) target = $region76
          $region75: #{tpu_custom_call.1} parent=71 // pred_region
            %v542 = vld [vmem:[#allocation2] sm:$0x1]
            %v543 = vmul.f32 %v542, 0.015625
            %v544 = vld [vmem:[#allocation3] sm:$0x1]
            %v545 = vmul.f32 %v544, 0.015625
            %v546 = vmul.f32 %v543, %v543
            %v547 = vsub.f32 %v545, %v546
            %v548 = vmax.f32 %v547, 0.0
            %v549 = vld [vmem:[%s5] sm:$0x1]
            %v550 = vadd.f32 %v548, 1e-05
            %v551 = vrsqrt.pop %v550
            %v552 = vmul.f32 %v551, %v550
            %v553 = vmul.f32 %v552, %v551
            %v554 = vmul.f32 0.5, %v553
            %v555 = vsub.f32 1.5, %v554
            %v556 = vmul.f32 %v551, %v555
            %vm557 = vweird.f32 %v550
            %vm558 = vweird.f32 %v551
            %vm559 = vmor %vm557, %vm558
            %v560 = vsel %vm559, %v551, %v556
            %v561 = vmul.f32 %v549, %v560
            %562 = vst [vmem:[#allocation4] sm:$0x1] %v561
            %v563 = vld [vmem:[%s6] sm:$0x1]
            %v564 = vmul.f32 %v543, %v561
            %v565 = vsub.f32 %v563, %v564
            %566 = vst [vmem:[#allocation5] sm:$0x1] %v565
          $region76: #{tpu_custom_call.1} parent=71 // pred_fallthru
            _
        $region72: #{tpu_custom_call.1} parent=55 // pred_fallthru
          _
        %p567 = scmp.eq.s32.totalorder %s32, 1
        // Predicated region
        $region77: #{tpu_custom_call.1} parent=55 // pred_check
          %p568 = pneg %p567
        $region78: #{tpu_custom_call.1} parent=55 // pred_check_branch
          %570 = sbr.rel (%p568) target = $region80
        $region79: #{tpu_custom_call.1} parent=55 // pred_region
          %v571 = vld [vmem:[#allocation4] sm:$0x1]
          %v573 = vperm.slane %v571, 0
          %v575 = vmul.f32 %v496, %v573
          %v576 = vmul.f32 %v497, %v573
          %v577 = vld [vmem:[#allocation5] sm:$0x1]
          %v579 = vperm.slane %v577, 0
          %v581 = vadd.f32 %v575, %v579
          %v582 = vadd.f32 %v576, %v579
          %v583 = vld [vmem:[#allocation11] sm:$0xff]
          %v584 = vld [vmem:[#allocation11 + $0x8] sm:$0xff]
          %v585 = vld [vmem:[#allocation11 + $0x10] sm:$0xff]
          %v586 = vld [vmem:[#allocation11 + $0x18] sm:$0xff]
          %v587 = vld [vmem:[#allocation11 + $0x20] sm:$0xff]
          %v588 = vld [vmem:[#allocation11 + $0x28] sm:$0xff]
          %v589 = vld [vmem:[#allocation11 + $0x30] sm:$0xff]
          %v590 = vld [vmem:[#allocation11 + $0x38] sm:$0xff]
          %v591 = vld [vmem:[#allocation11 + $0x40] sm:$0xff]
          %v592 = vld [vmem:[#allocation11 + $0x48] sm:$0xff]
          %v593 = vld [vmem:[#allocation11 + $0x50] sm:$0xff]
          %v594 = vld [vmem:[#allocation11 + $0x58] sm:$0xff]
          %v595 = vld [vmem:[#allocation11 + $0x60] sm:$0xff]
          %v596 = vld [vmem:[#allocation11 + $0x68] sm:$0xff]
          %v597 = vld [vmem:[#allocation11 + $0x70] sm:$0xff]
          %v598 = vld [vmem:[#allocation11 + $0x78] sm:$0xff]
          %v599 = vld [vmem:[%s8] sm:$0x1]
          %v601 = vperm.slane %v599, 0
          %603 = vmatpush.msra.mxu0 %v598
          %604 = vmatpush.msra.mxu0 %v597
          %605 = vmatpush.msra.mxu0 %v596
          %606 = vmatpush.msra.mxu0 %v595
          %607 = vmatpush.msra.mxu0 %v594
          %608 = vmatpush.msra.mxu0 %v593
          %609 = vmatpush.msra.mxu0 %v592
          %610 = vmatpush.msra.mxu0 %v591
          %611 = vmatpush.msra.mxu0 %v590
          %612 = vmatpush.msra.mxu0 %v589
          %613 = vmatpush.msra.mxu0 %v588
          %614 = vmatpush.msra.mxu0 %v587
          %615 = vmatpush.msra.mxu0 %v586
          %616 = vmatpush.msra.mxu0 %v585
          %617 = vmatpush.msra.mxu0 %v584
          %618 = vmatpush.msra.mxu0 %v583
          %619 = vmatmul.f32.gmra.mxu0 %v581
          %v620 = vpop.f32.mrf.mxu0
          %v621 = vadd.f32 %v601, %v620
          %622 = vmatmul.f32.gmra.mxu0 %v582
          %v623 = vpop.f32.mrf.mxu0
          %v624 = vadd.f32 %v601, %v623
          %625 = vdwg.mxu0
          %vm626 = vcmp.gt.f32.partialorder %v621, 0.0
          %vm627 = vcmp.gt.f32.partialorder %v624, 0.0
          %v628 = vmul.f32 %v621, 0.1
          %v629 = vmul.f32 %v624, 0.1
          %v630 = vsel %vm626, %v621, %v628
          %v631 = vsel %vm627, %v624, %v629
          %632 = vst [vmem:[%s419] sm:$0xff] %v630
          %633 = vst [vmem:[%s419 + $0x8] sm:$0xff] %v631
          %v634 = vld [vmem:[#allocation6] sm:$0xff]
          %v635 = vld [vmem:[%s433] sm:$0xff]
          %v636 = vld [vmem:[%s433 + $0x8] sm:$0xff]
          %637 = vxpose.xlu0.b32.start [1/16] %v635, 128
          %638 = vxpose.xlu0.b32.cont [2/16] %v636, 128
          %639 = vxpose.xlu0.b32.cont [3/16] 0.0, 128
          %640 = vxpose.xlu0.b32.cont [4/16] 0.0, 128
          %641 = vxpose.xlu0.b32.cont [5/16] 0.0, 128
          %642 = vxpose.xlu0.b32.cont [6/16] 0.0, 128
          %643 = vxpose.xlu0.b32.cont [7/16] 0.0, 128
          %644 = vxpose.xlu0.b32.cont [8/16] 0.0, 128
          %645 = vxpose.xlu0.b32.cont [9/16] 0.0, 128
          %646 = vxpose.xlu0.b32.cont [10/16] 0.0, 128
          %647 = vxpose.xlu0.b32.cont [11/16] 0.0, 128
          %648 = vxpose.xlu0.b32.cont [12/16] 0.0, 128
          %649 = vxpose.xlu0.b32.cont [13/16] 0.0, 128
          %650 = vxpose.xlu0.b32.cont [14/16] 0.0, 128
          %651 = vxpose.xlu0.b32.cont [15/16] 0.0, 128
          %652 = vxpose.xlu0.b32.end [16/16] 0.0, 128
          %v653 = vpop.trf.xlu0
          %v654 = vpop.trf.xlu0
          %v655 = vpop.trf.xlu0
          %v656 = vpop.trf.xlu0
          %v657 = vpop.trf.xlu0
          %v658 = vpop.trf.xlu0
          %v659 = vpop.trf.xlu0
          %v660 = vpop.trf.xlu0
          %v661 = vpop.trf.xlu0
          %v662 = vpop.trf.xlu0
          %v663 = vpop.trf.xlu0
          %v664 = vpop.trf.xlu0
          %v665 = vpop.trf.xlu0
          %v666 = vpop.trf.xlu0
          %v667 = vpop.trf.xlu0
          %v668 = vpop.trf.xlu0
          %vm669 = vcmask 130048
          %v671 = vsel %vm669, %v653, 0
          %673 = vmatpush.msra.mxu0 0.0
          %674 = vmatpush.msra.mxu0 0.0
          %675 = vmatpush.msra.mxu0 0.0
          %676 = vmatpush.msra.mxu0 0.0
          %677 = vmatpush.msra.mxu0 0.0
          %678 = vmatpush.msra.mxu0 0.0
          %679 = vmatpush.msra.mxu0 0.0
          %680 = vmatpush.msra.mxu0 0.0
          %681 = vmatpush.msra.mxu0 0.0
          %682 = vmatpush.msra.mxu0 0.0
          %683 = vmatpush.msra.mxu0 0.0
          %684 = vmatpush.msra.mxu0 0.0
          %685 = vmatpush.msra.mxu0 0.0
          %686 = vmatpush.msra.mxu0 0.0
          %687 = vmatpush.msra.mxu0 %v631
          %688 = vmatpush.msra.mxu0 %v630
          %689 = vmatmul.f32.gmra.mxu0 %v671
          %v690 = vpop.f32.mrf.mxu0
          %v691 = vadd.f32 0.0, %v690
          %692 = vdwg.mxu0
          %v693 = vadd.f32 %v634, %v691
          %694 = vst [vmem:[#allocation6] sm:$0xff] %v693
          %p695 = scmp.eq.s32.totalorder %s33, 3
          // Predicated region
          $region81: #{tpu_custom_call.1} parent=79 // pred_check
            %p696 = pneg %p695
          $region82: #{tpu_custom_call.1} parent=79 // pred_check_branch
            %698 = sbr.rel (%p696) target = $region84
          $region83: #{tpu_custom_call.1} parent=79 // pred_region
            %v699 = vld [vmem:[#allocation6] sm:$0xff]
            %v700 = vld [vmem:[%s1] sm:$0xff]
            %v701 = vsub.f32 %v699, %v700
            %v702 = vmul.f32 %v701, %v701
            %703 = vadd.xlane.f32.xlu0 %v702
            %v704 = vpop.xlane.xlu0 %703
            %v705 = vrot.slane %v704, 4
            %v706 = vadd.f32 %v704, %v705
            %v707 = vrot.slane %v706, 2
            %v708 = vadd.f32 %v706, %v707
            %v709 = vrot.slane %v708, 1
            %v710 = vadd.f32 %v708, %v709
            %s711 = vtos %v710
            %s712 = smul.f32 %s711, 0.03125
            %s713 = scalar_lea.smem [#allocation14], 0
            %714 = sst [smem:[%s713]] %s712
          $region84: #{tpu_custom_call.1} parent=79 // pred_fallthru
            _
        $region80: #{tpu_custom_call.1} parent=55 // pred_fallthru
          _
        %s715 = sand.u32 %s251, 1
        %s716 = scalar_lea.sflag [#allocation9], %s715
        %s717 = sand.u32 %s251, 1
        %s718 = smul.addr %s717, 16
        %s719 = scalar_lea.vmem [#allocation13], %s718
        // Predicated region
        $region85: #{tpu_custom_call.1} parent=55 // pred_check
          %p720 = pneg %p261
        $region86: #{tpu_custom_call.1} parent=55 // pred_check_branch
          %722 = sbr.rel (%p720) target = $region88
        $region87: #{tpu_custom_call.1} parent=55 // pred_region
          %s723 = smul.u32 %s32, %s33
          %s724 = smul.u32 2, %s723
          %726 = vsyncadd %s716, 0
          %s727 = smul.addr %s724, 8
          %s728 = scalar_lea.hbm %s9, %s727
          %s729 = sshll.u32 %s719, 4
          %s730 = int_to_ptr.vmem [resolvable:$true] %s729
          %s731 = sshll.u32 %s728, 4
          %s732 = int_to_ptr.hbm [resolvable:$true] %s731
          %737 = dma.vmem_to_hbm [thread:$0]  %s730, 256, %s732, %s716, 128, 128, 8
        $region88: #{tpu_custom_call.1} parent=55 // pred_fallthru
          _
        // Predicated region
        $region89: #{tpu_custom_call.1} parent=55 // pred_check
          %p738 = pneg %p282
        $region90: #{tpu_custom_call.1} parent=55 // pred_check_branch
          %740 = sbr.rel (%p738) target = $region92
        $region91: #{tpu_custom_call.1} parent=55 // pred_region
          %742 = vsyncadd [#allocation10], 0
          %s744 = sshll.u32 %s10, 4
          %s745 = int_to_ptr.hbm [resolvable:$true] %s744
          %747 = dma.smem_to_hbm [#allocation14], 16, %s745, [#allocation10]
        $region92: #{tpu_custom_call.1} parent=55 // pred_fallthru
          _
        // Predicated region
        $region93: #{tpu_custom_call.1} parent=55 // pred_check
          %p748 = pneg %p282
        $region94: #{tpu_custom_call.1} parent=55 // pred_check_branch
          %750 = sbr.rel (%p748) target = $region96
        $region95: #{tpu_custom_call.1} parent=55 // pred_region
          %752 = dma.done [#allocation10], 16
        $region96: #{tpu_custom_call.1} parent=55 // pred_fallthru
          _
        %753 = sfence
      $region56: #{tpu_custom_call.1} parent=5 // pred_fallthru
        _
      %p754 = scmp.le.s32.totalorder 2, %s23
      // Predicated region
      $region97: #{tpu_custom_call.1} parent=5 // pred_check
        %p755 = pneg %p754
      $region98: #{tpu_custom_call.1} parent=5 // pred_check_branch
        %757 = sbr.rel (%p755) target = $region100
      $region99: #{tpu_custom_call.1} parent=5 // pred_region
        %s758 = ssub.s32 %s23, 2
        // Predicated region
        $region101: #{tpu_custom_call.1} parent=99 // pred_check
          %p759 = pneg %p267
        $region102: #{tpu_custom_call.1} parent=99 // pred_check_branch
          %761 = sbr.rel (%p759) target = $region104
        $region103: #{tpu_custom_call.1} parent=99 // pred_region
          %s762 = sand.u32 %s252, 1
          %s763 = scalar_lea.sflag [#allocation9], %s762
          %s764 = sand.u32 %s252, 1
          %s765 = smul.addr %s764, 16
          %s766 = scalar_lea.vmem [#allocation13], %s765
          %768 = dma.done %s763, 256
        $region104: #{tpu_custom_call.1} parent=99 // pred_fallthru
          _
      $region100: #{tpu_custom_call.1} parent=5 // pred_fallthru
        _
    $region6: #{tpu_custom_call.1} parent=1 // loop_footer
      %s27 = sadd.s32 1, %s23
    $region7: #{tpu_custom_call.1} parent=1 // loop_footer_branch
      %22 = sbr.rel target = $region3
    $region8: #{tpu_custom_call.1} parent=1 // loop_exit
      _
    %769 = vsyncpa [#allocation8], 1
    %s770 = scalar_lea.sflag [#allocation8], 1
    %771 = vsyncpa %s770, 1
    %772 = vsyncpa [#allocation12], 1
    %773 = vsyncpa [#allocation9], 1
    %s774 = scalar_lea.sflag [#allocation9], 1
    %775 = vsyncpa %s774, 1
    %776 = vsyncpa [#allocation10], 1
    %s777 = scalar_lea.sflag [#allocation10], 1
    %778 = vsyncpa %s777, 1

</llo_original>
